<compile_context>
chip_gen: v7x
topology: tpu7x:2x2x1
jax: 0.10.0
libtpu: 0.0.40
codegen_flags: <defaults>
</compile_context>

<pallas_src>
import jax
import jax.numpy as jnp
from jax.experimental import pallas as pl
from jax.experimental.pallas import tpu as pltpu


def _round_up(x, m):
    return ((x + m - 1) // m) * m


def _make_rope_kernel(fold, concat_halves):
    """Build the kernel for a given static fold factor / half-width mode."""

    def kernel(pos_ref, freq_ref, cos_ref, sin_ref):
        # pos_ref:  (row_tile, fold) f32 positions, one scalar per packed row.
        # freq_ref: (fold, W) f32 frequencies; row g is nonzero only on lanes
        #           [g*head_dims, (g+1)*head_dims)  (for fold == 1 it is the
        #           plain (1, W) frequency row).
        # cos_ref / sin_ref: (row_tile, out_width)
        m_theta = pos_ref[:, 0:1] * freq_ref[0:1, :]          # VPU broadcast mul
        for g in range(1, fold):                               # disjoint support
            m_theta = m_theta + pos_ref[:, g:g + 1] * freq_ref[g:g + 1, :]
        c = jnp.cos(m_theta)                                   # EUP
        s = jnp.sin(m_theta)
        if concat_halves:                                      # only if half >= 128
            c = jnp.concatenate([c, c], axis=-1)
            s = jnp.concatenate([s, s], axis=-1)
        cos_ref[...] = c.astype(cos_ref.dtype)
        sin_ref[...] = s.astype(sin_ref.dtype)

    return kernel


def llama_rotary_embeddings(position_ids, inv_freq, out_dtype=jnp.float32):
    """position_ids: [bs, seq] (int or float), inv_freq: [head_dims // 2].

    Returns (cos, sin), each [bs, seq, head_dims] in `out_dtype`
    (matches value_state.dtype in the PyTorch module)."""
    bs, seq = position_ids.shape
    half = int(inv_freq.shape[0])
    head_dims = 2 * half
    rows = bs * seq

    # Lane-dense packing: fold consecutive rows into one 128-lane output row
    # when head_dims < 128 (avoids masked partial stores / lane-sparse DMA).
    if head_dims < 128 and 128 % head_dims == 0:
        fold = 128 // head_dims
    else:
        fold = 1

    # Half-width EUP trick only pays when half itself fills >= one full vreg.
    concat_halves = half >= 128          # implies fold == 1
    out_width = fold * head_dims

    itemsize = jnp.dtype(out_dtype).itemsize
    sub_align = 8 * max(1, 4 // itemsize)            # 8 for f32, 16 for bf16

    # Tile selection: up to 2048 packed rows (~1 MiB f32 / 512 KiB bf16 output
    # blocks at 128 lanes); otherwise split into ~2 steps so both v7x
    # TensorCores get work.  VMEM (double-buffered) stays ~6 MiB worst case.
    packed_rows = -(-rows // fold)
    max_tile = 2048
    row_tile = min(max_tile, _round_up(max(-(-packed_rows // 2), 1), sub_align))
    packed_rows_padded = _round_up(packed_rows, row_tile)
    grid = (packed_rows_padded // row_tile,)

    # Positions: cast to f32 (exact for positions < 2^24), pad, pack.
    total_rows = packed_rows_padded * fold
    pos_flat = position_ids.reshape(rows).astype(jnp.float32)
    if total_rows != rows:
        pos_flat = jnp.pad(pos_flat, (0, total_rows - rows))
    pos_packed = pos_flat.reshape(packed_rows_padded, fold)

    # Frequencies.
    inv_freq_f32 = inv_freq.astype(jnp.float32)
    if concat_halves:
        freq_arr = inv_freq_f32.reshape(1, half)
    else:
        freq_full = jnp.concatenate([inv_freq_f32, inv_freq_f32])   # (head_dims,)
        if fold == 1:
            freq_arr = freq_full.reshape(1, head_dims)
        else:
            # Row g carries freq_full on lanes [g*head_dims, (g+1)*head_dims).
            eye = jnp.eye(fold, dtype=jnp.float32)
            freq_arr = (eye[:, :, None] * freq_full[None, None, :]).reshape(
                fold, fold * head_dims)

    kernel = _make_rope_kernel(fold, concat_halves)

    out_shape = (
        jax.ShapeDtypeStruct((packed_rows_padded, out_width), out_dtype),
        jax.ShapeDtypeStruct((packed_rows_padded, out_width), out_dtype),
    )

    grid_spec = pltpu.PrefetchScalarGridSpec(
        num_scalar_prefetch=0,
        grid=grid,
        in_specs=[
            pl.BlockSpec((row_tile, fold), lambda i: (i, 0)),      # positions
            pl.BlockSpec(freq_arr.shape, lambda i: (0, 0)),        # shared freqs
        ],
        out_specs=[
            pl.BlockSpec((row_tile, out_width), lambda i: (i, 0)),
            pl.BlockSpec((row_tile, out_width), lambda i: (i, 0)),
        ],
    )

    cos, sin = pl.pallas_call(
        kernel,
        out_shape=out_shape,
        grid_spec=grid_spec,
        compiler_params=pltpu.CompilerParams(
            dimension_semantics=("parallel",)),
    )(pos_packed, freq_arr)

    # Unpack the lane-dense slab back to [bs, seq, head_dims] (contiguous).
    cos = cos.reshape(packed_rows_padded * fold, head_dims)[:rows]
    sin = sin.reshape(packed_rows_padded * fold, head_dims)[:rows]
    return cos.reshape(bs, seq, head_dims), sin.reshape(bs, seq, head_dims)


def make_inv_freq(head_dims, rope_theta_base=10000.0):
    # Mirrors: 1.0 / base ** (arange(0, head_dims, 2).float() / head_dims)
    exponents = jnp.arange(0, head_dims, 2, dtype=jnp.float32) / head_dims
    return 1.0 / (rope_theta_base ** exponents)


if __name__ == "__main__":
    key = jax.random.PRNGKey(0)

    bs, n_heads, seq, head_dims = 2, 4, 8, 32
    rope_theta_base = 10000.0

    # Deterministic "parameter" (inv_freq buffer) built in-script.
    inv_freq = make_inv_freq(head_dims, rope_theta_base)

    # value_state only supplies the output dtype in the PyTorch module.
    k1, k2 = jax.random.split(key)
    value_state = jax.random.normal(
        k1, (bs, n_heads, seq, head_dims), dtype=jnp.float32)
    position_ids = jnp.tile(jnp.arange(seq, dtype=jnp.int32)[None, :], (bs, 1))

    cos, sin = llama_rotary_embeddings(
        position_ids, inv_freq, out_dtype=value_state.dtype)
    cos = jax.block_until_ready(cos)
    sin = jax.block_until_ready(sin)

    # Pure-JAX f32 reference (mathematically identical to the PyTorch module:
    # the K=1 matmul theta @ m is an outer product pos * inv_freq).
    m_theta_ref = (position_ids.astype(jnp.float32)[:, :, None]
                   * inv_freq.astype(jnp.float32)[None, None, :])     # [bs,seq,half]
    m_theta_ref = jnp.concatenate([m_theta_ref, m_theta_ref], axis=-1)  # [bs,seq,hd]
    cos_ref = jnp.cos(m_theta_ref).astype(value_state.dtype)
    sin_ref = jnp.sin(m_theta_ref).astype(value_state.dtype)

    assert cos.shape == (bs, seq, head_dims) and sin.shape == (bs, seq, head_dims)
    assert jnp.allclose(cos, cos_ref, atol=1e-5, rtol=1e-5)
    assert jnp.allclose(sin, sin_ref, atol=1e-5, rtol=1e-5)

    print("KERNEL_OK")
</pallas_src>

<mosaic_0001>
module attributes {stable_mosaic.version = 11 : i64} {
  func.func @kernel(%arg0: i32, %arg1: memref<8x4xf32, #tpu.memory_space<vmem>>, %arg2: memref<4x128xf32, #tpu.memory_space<vmem>>, %arg3: memref<8x128xf32, #tpu.memory_space<vmem>>, %arg4: memref<8x128xf32, #tpu.memory_space<vmem>>) attributes {dimension_semantics = [#tpu.dimension_semantics<parallel>], iteration_bounds = array<i64: 1>, scalar_prefetch = 0 : i64, scratch_operands = 0 : i64, tpu.core_type = #tpu.core_type<tc>, window_params = [{transform_indices = @transform_0, window_bounds = array<i64: 8, 4>}, {pipeline_mode = #tpu.pipeline_mode<synchronous>, transform_indices = @transform_1, window_bounds = array<i64: 4, 128>}, {transform_indices = @transform_2, window_bounds = array<i64: 8, 128>}, {transform_indices = @transform_3, window_bounds = array<i64: 8, 128>}]} {
    %c0 = arith.constant 0 : index
    %c0_0 = arith.constant 0 : index
    %0 = vector.load %arg1[%c0, %c0_0] : memref<8x4xf32, #tpu.memory_space<vmem>>, vector<8x1xf32>
    %c0_1 = arith.constant 0 : index
    %c0_2 = arith.constant 0 : index
    %1 = vector.load %arg2[%c0_1, %c0_2] : memref<4x128xf32, #tpu.memory_space<vmem>>, vector<1x128xf32>
    %2 = vector.broadcast %0 : vector<8x1xf32> to vector<8x128xf32>
    %3 = vector.broadcast %1 : vector<1x128xf32> to vector<8x128xf32>
    %4 = arith.mulf %2, %3 : vector<8x128xf32>
    %c0_3 = arith.constant 0 : index
    %c1 = arith.constant 1 : index
    %5 = vector.load %arg1[%c0_3, %c1] : memref<8x4xf32, #tpu.memory_space<vmem>>, vector<8x1xf32>
    %c1_4 = arith.constant 1 : index
    %c0_5 = arith.constant 0 : index
    %6 = vector.load %arg2[%c1_4, %c0_5] : memref<4x128xf32, #tpu.memory_space<vmem>>, vector<1x128xf32>
    %7 = vector.broadcast %5 : vector<8x1xf32> to vector<8x128xf32>
    %8 = vector.broadcast %6 : vector<1x128xf32> to vector<8x128xf32>
    %9 = arith.mulf %7, %8 : vector<8x128xf32>
    %10 = arith.addf %4, %9 : vector<8x128xf32>
    %c0_6 = arith.constant 0 : index
    %c2 = arith.constant 2 : index
    %11 = vector.load %arg1[%c0_6, %c2] : memref<8x4xf32, #tpu.memory_space<vmem>>, vector<8x1xf32>
    %c2_7 = arith.constant 2 : index
    %c0_8 = arith.constant 0 : index
    %12 = vector.load %arg2[%c2_7, %c0_8] : memref<4x128xf32, #tpu.memory_space<vmem>>, vector<1x128xf32>
    %13 = vector.broadcast %11 : vector<8x1xf32> to vector<8x128xf32>
    %14 = vector.broadcast %12 : vector<1x128xf32> to vector<8x128xf32>
    %15 = arith.mulf %13, %14 : vector<8x128xf32>
    %16 = arith.addf %10, %15 : vector<8x128xf32>
    %c0_9 = arith.constant 0 : index
    %c3 = arith.constant 3 : index
    %17 = vector.load %arg1[%c0_9, %c3] : memref<8x4xf32, #tpu.memory_space<vmem>>, vector<8x1xf32>
    %c3_10 = arith.constant 3 : index
    %c0_11 = arith.constant 0 : index
    %18 = vector.load %arg2[%c3_10, %c0_11] : memref<4x128xf32, #tpu.memory_space<vmem>>, vector<1x128xf32>
    %19 = vector.broadcast %17 : vector<8x1xf32> to vector<8x128xf32>
    %20 = vector.broadcast %18 : vector<1x128xf32> to vector<8x128xf32>
    %21 = arith.mulf %19, %20 : vector<8x128xf32>
    %22 = arith.addf %16, %21 : vector<8x128xf32>
    %23 = math.cos %22 : vector<8x128xf32>
    %24 = math.sin %22 : vector<8x128xf32>
    %c0_12 = arith.constant 0 : index
    %c0_13 = arith.constant 0 : index
    %25 = vector.load %arg3[%c0_12, %c0_13] : memref<8x128xf32, #tpu.memory_space<vmem>>, vector<8x128xf32>
    tpu.vector_store %arg3[%c0_12, %c0_13], %23 {strides = array<i32>} : memref<8x128xf32, #tpu.memory_space<vmem>>, vector<8x128xf32>,
    %c0_14 = arith.constant 0 : index
    %c0_15 = arith.constant 0 : index
    %26 = vector.load %arg4[%c0_14, %c0_15] : memref<8x128xf32, #tpu.memory_space<vmem>>, vector<8x128xf32>
    tpu.vector_store %arg4[%c0_14, %c0_15], %24 {strides = array<i32>} : memref<8x128xf32, #tpu.memory_space<vmem>>, vector<8x128xf32>,
    return
  }
  func.func @transform_0(%arg0: i32) -> (i32, i32) {
    %c0_i32 = arith.constant 0 : i32
    %c0_i32_0 = arith.constant 0 : i32
    return %arg0, %c0_i32 : i32, i32
  }
  func.func @transform_1(%arg0: i32) -> (i32, i32) {
    %c0_i32 = arith.constant 0 : i32
    %c0_i32_0 = arith.constant 0 : i32
    %c0_i32_1 = arith.constant 0 : i32
    return %c0_i32, %c0_i32_0 : i32, i32
  }
  func.func @transform_2(%arg0: i32) -> (i32, i32) {
    %c0_i32 = arith.constant 0 : i32
    %c0_i32_0 = arith.constant 0 : i32
    return %arg0, %c0_i32 : i32, i32
  }
  func.func @transform_3(%arg0: i32) -> (i32, i32) {
    %c0_i32 = arith.constant 0 : i32
    %c0_i32_0 = arith.constant 0 : i32
    return %arg0, %c0_i32 : i32, i32
  }
}

</mosaic_0001>

<llo_original>
// kernel: tpu_custom_call.1
$region0: #{tpu_custom_call.1}
  #allocation0 [shape = 'u32[]', space=smem, size = 0x4, offset = 0x4, fixed_abs, tag = 'smem constant byte address 0x4 - core index']
  #allocation1 [shape = 'u32[144,128]{1,0:T(1,128)}', space=vmem, size = 0x12000, scoped, tag = 'internal scratch']
  %s0 = inlined_call_operand.vmem [shape: f32[8,4], index: 0, kind: input, shape index: {}]
  %s1 = inlined_call_operand.vmem [shape: f32[4,128], index: 1, kind: input, shape index: {}]
  %s2 = inlined_call_operand.hbm [shape: f32[8,128], index: 2, kind: output, shape index: {0}]
  %s3 = inlined_call_operand.hbm [shape: f32[8,128], index: 3, kind: output, shape index: {1}]
  %4 = xla_tuple %s2, %s3
  %s5 = sld [smem:[#allocation0]]
  $region26: #{tpu_custom_call.1} parent=0
    _
  %s7 = ssub.s32 1, %s5
  %s8 = scalar_select 0, %s7, %s5
  $region1: #{tpu_custom_call.1} parent=0
    #allocation2 [shape = 'u8[4096]{0}', space=vmem, size = 0x1000, scoped, tag = 'output window, operand 0, single buffered']
    #allocation3 [shape = 's32[1]{0}', space=sflag, size = 0x4, scoped, tag = 'scoped memory for tpu_custom_call.1']
    #allocation4 [shape = 'u8[4096]{0}', space=vmem, size = 0x1000, scoped, tag = 'output window, operand 1, single buffered']
    #allocation5 [shape = 's32[1]{0}', space=sflag, size = 0x4, scoped, tag = 'scoped memory for tpu_custom_call.1']
    %9 = vsyncpa [#allocation3], 0
    %10 = vsyncpa [#allocation5], 0
    // Predicated region
    $region2: #{tpu_custom_call.1} parent=1 // pred_check
      _
    $region3: #{tpu_custom_call.1} parent=1 // pred_check_branch
      %12 = sbr.rel (0) target = $region5
    $region4: #{tpu_custom_call.1} parent=1 // pred_region
      _
    $region5: #{tpu_custom_call.1} parent=1 // pred_fallthru
      _
    // Predicated region
    $region6: #{tpu_custom_call.1} parent=1 // pred_check
      _
    $region7: #{tpu_custom_call.1} parent=1 // pred_check_branch
      %14 = sbr.rel (0) target = $region9
    $region8: #{tpu_custom_call.1} parent=1 // pred_region
      _
    $region9: #{tpu_custom_call.1} parent=1 // pred_fallthru
      _
    %v15 = vld [vmem:[%s0] sm:$0xff]
    %v16 = vld [vmem:[%s1] sm:$0x1]
    %18 = vset.pattern.permute.xlu0 0
    %19 = vperm.xlu0 %18, %v15
    %v20 = vpop.permute.xlu0 %19
    %v22 = vlaneseq
    %v23 = vshrl.u32 %v22, 7
    %v24 = vsub.s32 0, %v23
    %v25 = vrot.slane %v16, %v24
    %v26 = vmul.f32 %v20, %v25
    %v27 = vld [vmem:[%s1 + $0x1] sm:$0x1]
    %28 = vset.pattern.permute.xlu0 1
    %29 = vperm.xlu0 %28, %v15
    %v30 = vpop.permute.xlu0 %29
    %v32 = vlaneseq
    %v33 = vshrl.u32 %v32, 7
    %v34 = vsub.s32 0, %v33
    %v35 = vrot.slane %v27, %v34
    %v36 = vmul.f32 %v30, %v35
    %v37 = vadd.f32 %v26, %v36
    %v38 = vld [vmem:[%s1 + $0x2] sm:$0x1]
    %39 = vset.pattern.permute.xlu0 2
    %40 = vperm.xlu0 %39, %v15
    %v41 = vpop.permute.xlu0 %40
    %v43 = vlaneseq
    %v44 = vshrl.u32 %v43, 7
    %v45 = vsub.s32 0, %v44
    %v46 = vrot.slane %v38, %v45
    %v47 = vmul.f32 %v41, %v46
    %v48 = vadd.f32 %v37, %v47
    %v49 = vld [vmem:[%s1 + $0x3] sm:$0x1]
    %50 = vset.pattern.permute.xlu0 3
    %51 = vperm.xlu0 %50, %v15
    %v52 = vpop.permute.xlu0 %51
    %v54 = vlaneseq
    %v55 = vshrl.u32 %v54, 7
    %v56 = vsub.s32 0, %v55
    %v57 = vrot.slane %v49, %v56
    %v58 = vmul.f32 %v52, %v57
    %v59 = vadd.f32 %v48, %v58
    %v60 = vand.u32 2147483647, %v59
    %vm61 = vcmp.le.f32.partialorder %v60, 0.7853982
    %vm62 = vcmp.lt.s32.totalorder %v59, 0
    %v63 = vand.u32 %v59, 2139095040
    %v64 = vshrl.u32 %v63, 23
    %v65 = vsub.s32 %v64, 127
    %v66 = vand.u32 2147483647, %v59
    %v67 = vand.u32 %v66, 8388607
    %v68 = vor.u32 %v67, 8388608
    %v69 = vsub.s32 0, %v68
    %v70 = vadd.s32 %v65, 1
    %vm71 = vcmp.gt.s32.totalorder %v70, 0
    %v72 = vsel %vm71, %v70, 0
    %v73 = vshrl.u32 %v72, 5
    %v74 = vand.u32 %v72, 31
    %v75 = vsub.s32 32, %v74
    %v76 = vshrl.u32 683565275, %v75
    %v77 = vshll.u32 683565275, %v74
    %v78 = vshrl.u32 2475754826, %v75
    %v79 = vor.u32 %v77, %v78
    %v80 = vshll.u32 2475754826, %v74
    %v81 = vshrl.u32 2131351028, %v75
    %v82 = vor.u32 %v80, %v81
    %v83 = vshll.u32 2131351028, %v74
    %v84 = vshrl.u32 2102212464, %v75
    %v85 = vor.u32 %v83, %v84
    %v86 = vshll.u32 2102212464, %v74
    %v87 = vshrl.u32 920167782, %v75
    %v88 = vor.u32 %v86, %v87
    %v89 = vshll.u32 920167782, %v74
    %v90 = vshrl.u32 1326507024, %v75
    %v91 = vor.u32 %v89, %v90
    %vm92 = vcmp.lt.s32.totalorder %v73, 1
    %vm93 = vcmp.lt.s32.totalorder %v73, 2
    %vm94 = vcmp.lt.s32.totalorder %v73, 3
    %vm95 = vcmp.lt.s32.totalorder %v73, 4
    %v96 = vsel %vm92, %v76, %v79
    %v97 = vsel %vm95, %v85, 2102212464
    %v98 = vsel %vm94, %v82, %v97
    %v99 = vsel %vm93, %v96, %v98
    %v100 = vsel %vm92, %v79, %v82
    %v101 = vsel %vm95, %v88, 920167782
    %v102 = vsel %vm94, %v85, %v101
    %v103 = vsel %vm93, %v100, %v102
    %v104 = vsel %vm92, %v82, %v85
    %v105 = vsel %vm95, %v91, 1326507024
    %v106 = vsel %vm94, %v88, %v105
    %v107 = vsel %vm93, %v104, %v106
    %v108 = vshll.u32 %v68, 8
    %v109 = vmul.u32.u64.compose %v108, %v107
    %v110 = vextract.low.u32 %v109
    %v111 = vextract.high.u32 %v109
    %v112 = vmul.u32.u64.compose %v108, %v103
    %v113 = vextract.low.u32 %v112
    %v114 = vextract.high.u32 %v112
    %v115 = vmul.u32 %v108, %v99
    %v116 = vadd.s32 %v111, %v113
    %vm117 = vc.u32 %v111, %v113
    %v118 = vadd.s32 %v114, 1
    %v119 = vsel %vm117, %v118, %v114
    %v120 = vadd.s32 %v115, %v119
    %v121 = vadd.s32 %v120, 536870912
    %v122 = vshrl.u32 %v121, 30
    %v123 = vshll.u32 %v122, 30
    %v124 = vsub.s32 %v120, %v123
    %vm125 = vcmp.lt.s32.totalorder %v124, 0
    %v126 = vsub.s32 0, %v124
    %v127 = vsel %vm125, %v126, %v124
    %v128 = vclz %v127
    %v129 = vsub.s32 %v128, 2
    %vm130 = vcmp.gt.s32.totalorder 0, %v129
    %v131 = vsel %vm130, 0, %v129
    %v132 = vsub.s32 32, %v131
    %v133 = vshll.u32 %v124, %v131
    %v134 = vshrl.u32 %v116, %v132
    %v135 = vor.u32 %v133, %v134
    %v136 = vsub.s32 4294967266, %v131
    %v137 = vadd.s32 %v136, 127
    %v138 = vshll.u32 %v137, 23
    %v139 = vor.u32 4788187, %v138
    %v140 = vand.u32 2147483647, %v139
    %v142 = vcvt.s32.f32 %v135
    %v143 = vmul.f32 %v142, %v140
    %v144 = vxor.u32 %v143, 2147483648
    %v145 = vsel %vm62, %v144, %v143
    %v146 = vsub.s32 4, %v122
    %v147 = vsel %vm62, %v146, %v122
    %v148 = vsel %vm61, %v59, %v145
    %v149 = vsel %vm61, 0, %v147
    %v150 = vcosq.f32.pop %v148
    %v151 = vsinq.f32.pop %v148
    %vm152 = vweird.f32 %v59
    %v153 = vand.u32 %v149, 3
    %vm154 = vcmp.lt.s32.totalorder %v153, 2
    %vm155 = vcmp.eq.s32.totalorder %v153, 0
    %v156 = vxor.u32 %v151, 2147483648
    %v157 = vsel %vm155, %v150, %v156
    %vm158 = vcmp.eq.s32.totalorder %v153, 2
    %v159 = vxor.u32 %v150, 2147483648
    %v160 = vsel %vm158, %v159, %v151
    %v161 = vsel %vm154, %v157, %v160
    %v162 = vsel %vm152, nan, %v161
    %v163 = vand.u32 2147483647, %v59
    %vm164 = vcmp.le.f32.partialorder %v163, 0.7853982
    %vm165 = vcmp.lt.s32.totalorder %v59, 0
    %v166 = vand.u32 %v59, 2139095040
    %v167 = vshrl.u32 %v166, 23
    %v168 = vsub.s32 %v167, 127
    %v169 = vand.u32 2147483647, %v59
    %v170 = vand.u32 %v169, 8388607
    %v171 = vor.u32 %v170, 8388608
    %v172 = vsub.s32 0, %v171
    %v173 = vadd.s32 %v168, 1
    %vm174 = vcmp.gt.s32.totalorder %v173, 0
    %v175 = vsel %vm174, %v173, 0
    %v176 = vshrl.u32 %v175, 5
    %v177 = vand.u32 %v175, 31
    %v178 = vsub.s32 32, %v177
    %v179 = vshrl.u32 683565275, %v178
    %v180 = vshll.u32 683565275, %v177
    %v181 = vshrl.u32 2475754826, %v178
    %v182 = vor.u32 %v180, %v181
    %v183 = vshll.u32 2475754826, %v177
    %v184 = vshrl.u32 2131351028, %v178
    %v185 = vor.u32 %v183, %v184
    %v186 = vshll.u32 2131351028, %v177
    %v187 = vshrl.u32 2102212464, %v178
    %v188 = vor.u32 %v186, %v187
    %v189 = vshll.u32 2102212464, %v177
    %v190 = vshrl.u32 920167782, %v178
    %v191 = vor.u32 %v189, %v190
    %v192 = vshll.u32 920167782, %v177
    %v193 = vshrl.u32 1326507024, %v178
    %v194 = vor.u32 %v192, %v193
    %vm195 = vcmp.lt.s32.totalorder %v176, 1
    %vm196 = vcmp.lt.s32.totalorder %v176, 2
    %vm197 = vcmp.lt.s32.totalorder %v176, 3
    %vm198 = vcmp.lt.s32.totalorder %v176, 4
    %v199 = vsel %vm195, %v179, %v182
    %v200 = vsel %vm198, %v188, 2102212464
    %v201 = vsel %vm197, %v185, %v200
    %v202 = vsel %vm196, %v199, %v201
    %v203 = vsel %vm195, %v182, %v185
    %v204 = vsel %vm198, %v191, 920167782
    %v205 = vsel %vm197, %v188, %v204
    %v206 = vsel %vm196, %v203, %v205
    %v207 = vsel %vm195, %v185, %v188
    %v208 = vsel %vm198, %v194, 1326507024
    %v209 = vsel %vm197, %v191, %v208
    %v210 = vsel %vm196, %v207, %v209
    %v211 = vshll.u32 %v171, 8
    %v212 = vmul.u32.u64.compose %v211, %v210
    %v213 = vextract.low.u32 %v212
    %v214 = vextract.high.u32 %v212
    %v215 = vmul.u32.u64.compose %v211, %v206
    %v216 = vextract.low.u32 %v215
    %v217 = vextract.high.u32 %v215
    %v218 = vmul.u32 %v211, %v202
    %v219 = vadd.s32 %v214, %v216
    %vm220 = vc.u32 %v214, %v216
    %v221 = vadd.s32 %v217, 1
    %v222 = vsel %vm220, %v221, %v217
    %v223 = vadd.s32 %v218, %v222
    %v224 = vadd.s32 %v223, 536870912
    %v225 = vshrl.u32 %v224, 30
    %v226 = vshll.u32 %v225, 30
    %v227 = vsub.s32 %v223, %v226
    %vm228 = vcmp.lt.s32.totalorder %v227, 0
    %v229 = vsub.s32 0, %v227
    %v230 = vsel %vm228, %v229, %v227
    %v231 = vclz %v230
    %v232 = vsub.s32 %v231, 2
    %vm233 = vcmp.gt.s32.totalorder 0, %v232
    %v234 = vsel %vm233, 0, %v232
    %v235 = vsub.s32 32, %v234
    %v236 = vshll.u32 %v227, %v234
    %v237 = vshrl.u32 %v219, %v235
    %v238 = vor.u32 %v236, %v237
    %v239 = vsub.s32 4294967266, %v234
    %v240 = vadd.s32 %v239, 127
    %v241 = vshll.u32 %v240, 23
    %v242 = vor.u32 4788187, %v241
    %v243 = vand.u32 2147483647, %v242
    %v245 = vcvt.s32.f32 %v238
    %v246 = vmul.f32 %v245, %v243
    %v247 = vxor.u32 %v246, 2147483648
    %v248 = vsel %vm165, %v247, %v246
    %v249 = vsub.s32 4, %v225
    %v250 = vsel %vm165, %v249, %v225
    %v251 = vsel %vm164, %v59, %v248
    %v252 = vsel %vm164, 0, %v250
    %v253 = vcosq.f32.pop %v251
    %v254 = vsinq.f32.pop %v251
    %vm255 = vweird.f32 %v59
    %v256 = vadd.s32 %v252, 3
    %v257 = vand.u32 %v256, 3
    %vm258 = vcmp.lt.s32.totalorder %v257, 2
    %vm259 = vcmp.eq.s32.totalorder %v257, 0
    %v260 = vxor.u32 %v254, 2147483648
    %v261 = vsel %vm259, %v253, %v260
    %vm262 = vcmp.eq.s32.totalorder %v257, 2
    %v263 = vxor.u32 %v253, 2147483648
    %v264 = vsel %vm262, %v263, %v254
    %v265 = vsel %vm258, %v261, %v264
    %v266 = vsel %vm255, nan, %v265
    %267 = vst [vmem:[#allocation2] sm:$0xff] %v162
    %268 = vst [vmem:[#allocation4] sm:$0xff] %v266
    // Predicated region
    $region10: #{tpu_custom_call.1} parent=1 // pred_check
      _
    $region11: #{tpu_custom_call.1} parent=1 // pred_check_branch
      %270 = sbr.rel (0) target = $region13
    $region12: #{tpu_custom_call.1} parent=1 // pred_region
      %s272 = ssub.s32 128, 128
      %273 = vsyncadd [#allocation3], %s272
      %s275 = sshll.u32 [#allocation2], 4
      %s276 = int_to_ptr.vmem [resolvable:$true] %s275
      %278 = dma.vmem_to_hbm [thread:$0]  %s276, 128, %s2, [#allocation3]
    $region13: #{tpu_custom_call.1} parent=1 // pred_fallthru
      _
    // Predicated region
    $region14: #{tpu_custom_call.1} parent=1 // pred_check
      _
    $region15: #{tpu_custom_call.1} parent=1 // pred_check_branch
      %280 = sbr.rel (0) target = $region17
    $region16: #{tpu_custom_call.1} parent=1 // pred_region
      %s282 = ssub.s32 128, 128
      %283 = vsyncadd [#allocation5], %s282
      %s285 = sshll.u32 [#allocation4], 4
      %s286 = int_to_ptr.vmem [resolvable:$true] %s285
      %288 = dma.vmem_to_hbm [thread:$0]  %s286, 128, %s3, [#allocation5]
    $region17: #{tpu_custom_call.1} parent=1 // pred_fallthru
      _
    // Predicated region
    $region18: #{tpu_custom_call.1} parent=1 // pred_check
      _
    $region19: #{tpu_custom_call.1} parent=1 // pred_check_branch
      %290 = sbr.rel (0) target = $region21
    $region20: #{tpu_custom_call.1} parent=1 // pred_region
      %291 = dma.done [#allocation3], 128
    $region21: #{tpu_custom_call.1} parent=1 // pred_fallthru
      _
    // Predicated region
    $region22: #{tpu_custom_call.1} parent=1 // pred_check
      _
    $region23: #{tpu_custom_call.1} parent=1 // pred_check_branch
      %293 = sbr.rel (0) target = $region25
    $region24: #{tpu_custom_call.1} parent=1 // pred_region
      %294 = dma.done [#allocation5], 128
    $region25: #{tpu_custom_call.1} parent=1 // pred_fallthru
      _
    %295 = vsyncpa [#allocation3], 1
    %296 = vsyncpa [#allocation5], 1

</llo_original>
